<compile_context>
chip_gen: v7x
topology: tpu7x:2x2x1
jax: 0.10.0
libtpu: 0.0.40
codegen_flags: <defaults>
</compile_context>

<pallas_src>
import functools
import math

import jax
import jax.numpy as jnp
from jax.experimental import pallas as pl
from jax.experimental.pallas import tpu as pltpu

LANE = 128


def _round_up(v: int, m: int) -> int:
    return ((v + m - 1) // m) * m


def _divisors_multiple_of(n: int, m: int, max_val=None):
    """Divisors of n that are multiples of m, descending, optionally <= max_val."""
    out = set()
    i = 1
    while i * i <= n:
        if n % i == 0:
            for d in (i, n // i):
                if d % m == 0 and (max_val is None or d <= max_val):
                    out.add(d)
        i += 1
    return sorted(out, reverse=True)


def _vmem_bytes(tm, tk, tn, nk, nj, in_bytes, out_bytes, has_bias):
    """Estimated resident VMEM for one tile configuration."""
    wbuf = 1 if (nj == 1 and nk == 1) else 2        # resident weight -> single buffer
    total = (2 * tm * tk + wbuf * tk * tn) * in_bytes   # x (double-buffered) + weight
    if has_bias:
        total += wbuf * tn * 4                          # (1, tn) f32 bias row
    total += 2 * tm * tn * out_bytes                    # output tile (double-buffered)
    if nk > 1:
        total += tm * tn * 4                            # f32 accumulator scratch
    return total


def _select_tiles(M, K_p, N_p, sub, in_bytes, out_bytes, budget, tm_cap, tn_cap, has_bias):
    """Pick (tm, tk, tn, M_p) under the VMEM budget.

    Preference: un-tiled K > full resident weight (tn == N_p) > large tm.
    tm is chosen to divide M rounded to the sublane granule, so x needs no
    row padding (and hence no extra HBM copy) in the common case.
    """
    M_p0 = _round_up(max(M, 1), sub)
    tm_cap = min(max(tm_cap, sub), M_p0)

    tm_cands = _divisors_multiple_of(M_p0, sub, max_val=tm_cap)
    pad_rows_to_tile = False
    if not tm_cands or tm_cands[0] < min(128, M_p0):
        # Awkward factorization: accept padding M up to a multiple of the tile
        # rather than paying per-step overhead on thousands of tiny row tiles.
        pad_rows_to_tile = True
        pool = {tm_cap, max(tm_cap // 2, sub), 512, 256, 128, 64, sub}
        tm_cands = sorted({_round_up(min(t, tm_cap), sub) for t in pool if t >= sub},
                          reverse=True)

    tk_cands = _divisors_multiple_of(K_p, LANE)               # full K first
    tn_cands = _divisors_multiple_of(N_p, LANE, max_val=tn_cap)  # full N first

    for tm_floor in (min(256, tm_cands[0]), sub):
        for tk in tk_cands:
            nk = K_p // tk
            for tn in tn_cands:
                nj = N_p // tn
                for tm in tm_cands:
                    if tm < tm_floor:
                        break
                    if _vmem_bytes(tm, tk, tn, nk, nj, in_bytes, out_bytes,
                                   has_bias) <= budget:
                        M_p = _round_up(M, tm) if pad_rows_to_tile else M_p0
                        return tm, tk, tn, M_p
    # Absolute fallback: smallest tiles (budget absurdly small).
    tm, tk, tn = tm_cands[-1], tk_cands[-1], tn_cands[-1]
    M_p = _round_up(M, tm) if pad_rows_to_tile else M_p0
    return tm, tk, tn, M_p


def _sine_layer_kernel(*refs, omega_0, add_bias, k_grid):
    """refs = (x, w[, b], out[, acc])   —   out = sin(omega_0 * (x @ w [+ b]))."""
    if add_bias:
        x_ref, w_ref, b_ref = refs[0], refs[1], refs[2]
        rest = refs[3:]
    else:
        x_ref, w_ref = refs[0], refs[1]
        b_ref = None
        rest = refs[2:]

    def epilogue(z, o_ref):
        if add_bias:
            z = z + b_ref[...]          # f32 bias add (only when not MXU-folded)
        if omega_0 != 1.0:              # static: folded-omega callers skip the mul
            z = omega_0 * z
        o_ref[...] = jnp.sin(z).astype(o_ref.dtype)

    if not k_grid:
        (o_ref,) = rest
        z = jnp.dot(x_ref[...], w_ref[...], preferred_element_type=jnp.float32)
        epilogue(z, o_ref)
    else:
        o_ref, acc_ref = rest
        kk = pl.program_id(2)

        @pl.when(kk == 0)
        def _():
            acc_ref[...] = jnp.zeros_like(acc_ref)

        acc_ref[...] += jnp.dot(x_ref[...], w_ref[...],
                                preferred_element_type=jnp.float32)

        @pl.when(kk == pl.num_programs(2) - 1)
        def _():
            epilogue(acc_ref[...], o_ref)


def sine_layer(x, w_t, b=None, omega_0=30.0, *, tm=1024, tn=None, out_dtype=None,
               bf16_matmul=False, fold_bias=None, vmem_budget_bytes=None):
    """out = sin(omega_0 * (x @ w_t + b)).

    x:   [M, K]  activations (f32 or bf16)
    w_t: [K, N]  transposed nn.Linear weight
    b:   [N]     bias (or None)
    """
    M, K = x.shape
    Kw, N = w_t.shape
    assert K == Kw, f"in_features mismatch: {K} vs {Kw}"
    if out_dtype is None:
        out_dtype = x.dtype

    # Optional bf16 MXU operands (recommended default on v6e/v7x production:
    # ~3x MXU rate, half the x/w HBM+VMEM bytes; accumulation stays f32).
    if bf16_matmul and x.dtype == jnp.float32:
        x = x.astype(jnp.bfloat16)
    if w_t.dtype != x.dtype:
        w_t = w_t.astype(x.dtype)

    in_dtype = x.dtype
    in_bytes = jnp.dtype(in_dtype).itemsize
    out_bytes = jnp.dtype(out_dtype).itemsize
    sub = {4: 8, 2: 16, 1: 32}.get(in_bytes, 8)     # sublane granule

    K_p = _round_up(K, LANE)
    N_p = _round_up(N, LANE)

    # Bias: fold into the matmul via the K-padding slack (1s column in x, bias
    # row in w).  Auto only when exact (f32) and free (K already lane-padded).
    has_bias = b is not None
    if fold_bias is None:
        fold_bias = has_bias and in_dtype == jnp.float32 and (K % LANE != 0)
    fold_bias = bool(fold_bias and has_bias)
    if fold_bias and K_p == K:            # explicit request: make room for the 1s column
        K_p = _round_up(K + 1, LANE)
    add_bias = has_bias and not fold_bias

    # Per-generation VMEM budget (v7x: 64 MiB physical; v5e/v6e: 128 MiB).
    try:
        vmem_cap = int(pltpu.get_tpu_info().vmem_capacity_bytes)
    except Exception:
        vmem_cap = 64 << 20
    budget = (vmem_budget_bytes if vmem_budget_bytes is not None
              else min(vmem_cap // 2, 48 << 20))

    tn_cap = N_p if tn is None else min(N_p, max(LANE, _round_up(int(tn), LANE)))
    tm_cap = max(sub, _round_up(int(tm), sub))

    tm, tk, tn, M_p = _select_tiles(M, K_p, N_p, sub, in_bytes, out_bytes,
                                    budget, tm_cap, tn_cap, add_bias)
    num_i, num_j, num_k = M_p // tm, N_p // tn, K_p // tk

    # v7x megacore: guarantee >= 2 steps along a parallel axis so both
    # TensorCores get work (harmless one extra grid step elsewhere).
    if num_i * num_j == 1 and tm >= 2 * sub and (tm // 2) % sub == 0:
        tm //= 2
        num_i = M_p // tm

    # ---- host-side padding: only when actually required.  For lane-aligned
    # production shapes (M % sub == 0, K % 128 == 0, N % 128 == 0) x passes
    # through untouched and no output slice is emitted.
    if (M_p, K_p) != (M, K):
        x = jnp.pad(x, ((0, M_p - M), (0, K_p - K)))
    if fold_bias:
        x = x.at[:, K].set(jnp.asarray(1.0, in_dtype))
    if (K_p, N_p) != (K, N):
        w_t = jnp.pad(w_t, ((0, K_p - K), (0, N_p - N)))
    if fold_bias:
        w_t = w_t.at[K, :].set(jnp.pad(b.astype(in_dtype), (0, N_p - N)))

    b2 = None
    if add_bias:
        b2 = b.astype(jnp.float32).reshape(1, N)
        if N_p != N:
            b2 = jnp.pad(b2, ((0, 0), (0, N_p - N)))

    k_grid = num_k > 1
    single_w = (num_j == 1 and num_k == 1)
    wb_mode = dict(pipeline_mode=pl.Buffered(1)) if single_w else {}

    if not k_grid:
        grid = (num_i, num_j)
        x_spec = pl.BlockSpec((tm, K_p), lambda i, j: (i, 0))
        w_spec = pl.BlockSpec((K_p, tn), lambda i, j: (0, j), **wb_mode)
        b_spec = pl.BlockSpec((1, tn), lambda i, j: (0, j), **wb_mode)
        o_spec = pl.BlockSpec((tm, tn), lambda i, j: (i, j))
        scratch = []
        semantics = ("parallel", "parallel")
    else:
        grid = (num_i, num_j, num_k)
        x_spec = pl.BlockSpec((tm, tk), lambda i, j, k: (i, k))
        w_spec = pl.BlockSpec((tk, tn), lambda i, j, k: (k, j))
        b_spec = pl.BlockSpec((1, tn), lambda i, j, k: (0, j))
        o_spec = pl.BlockSpec((tm, tn), lambda i, j, k: (i, j))
        scratch = [pltpu.VMEM((tm, tn), jnp.float32)]
        semantics = ("parallel", "parallel", "arbitrary")

    in_specs = [x_spec, w_spec] + ([b_spec] if add_bias else [])
    args = (x, w_t) + ((b2,) if add_bias else ())

    total_bytes = _vmem_bytes(tm, tk, tn, num_k, num_j, in_bytes, out_bytes, add_bias)
    vmem_limit = int(min(0.9 * vmem_cap, max(2 * total_bytes + (4 << 20), 32 << 20)))

    kernel = functools.partial(_sine_layer_kernel, omega_0=float(omega_0),
                               add_bias=add_bias, k_grid=k_grid)

    out = pl.pallas_call(
        kernel,
        out_shape=jax.ShapeDtypeStruct((M_p, N_p), out_dtype),
        grid_spec=pltpu.PrefetchScalarGridSpec(
            num_scalar_prefetch=0,
            grid=grid,
            in_specs=in_specs,
            out_specs=o_spec,
            scratch_shapes=scratch,
        ),
        compiler_params=pltpu.CompilerParams(
            dimension_semantics=semantics,
            vmem_limit_bytes=vmem_limit,
        ),
    )(*args)

    if (M_p, N_p) != (M, N):
        out = out[:M, :N]
    return out


def init_sine_layer_params(key, in_features, out_features,
                           is_first=False, omega_0=30.0, bias=True):
    """Synthetic init matching SineLayer.init_weights shapes/ranges (f32)."""
    kw, kb = jax.random.split(key)
    if is_first:
        bound = 1.0 / in_features
    else:
        bound = math.sqrt(6.0 / in_features) / omega_0
    # nn.Linear weight is [out_features, in_features]; store transposed [in, out].
    w = jax.random.uniform(kw, (out_features, in_features), jnp.float32,
                           minval=-bound, maxval=bound)
    w_t = w.T
    b_bound = 1.0 / math.sqrt(in_features)
    b = (jax.random.uniform(kb, (out_features,), jnp.float32,
                            minval=-b_bound, maxval=b_bound)
         if bias else jnp.zeros((out_features,), jnp.float32))
    return w_t, b


if __name__ == "__main__":
    key = jax.random.PRNGKey(0)
    k1, k2, k3, k4 = jax.random.split(key, 4)
    omega = 30.0

    def ref_fwd(x, w_t, b, om):
        return jnp.sin(om * (x.astype(jnp.float32) @ w_t.astype(jnp.float32)
                             + b[None, :]))

    # --- Case 1: f32, K % 128 != 0 -> lane padding + bias folded into the MXU,
    # omega pre-folded into the parameters (production call style).
    M, K, N = 64, 32, 48
    x = jax.random.normal(k1, (M, K), jnp.float32)
    w_t, b = init_sine_layer_params(k2, K, N, is_first=True, omega_0=omega)
    out = jax.block_until_ready(sine_layer(x, w_t * omega, b * omega, omega_0=1.0))
    assert out.shape == (M, N)
    assert jnp.allclose(out, ref_fwd(x, w_t, b, omega), atol=1e-5, rtol=1e-5)

    # --- Case 2: bf16 operands (bf16 MXU, f32 accumulation, f32 bias/sin epilogue).
    x_bf = x.astype(jnp.bfloat16)
    w_bf = (w_t * omega).astype(jnp.bfloat16)
    out_bf = jax.block_until_ready(sine_layer(x_bf, w_bf, b * omega, omega_0=1.0))
    ref_bf = jnp.sin(x_bf.astype(jnp.float32) @ w_bf.astype(jnp.float32)
                     + (b * omega)[None, :])
    assert out_bf.shape == (M, N)
    assert jnp.allclose(out_bf.astype(jnp.float32), ref_bf, atol=3e-2, rtol=0)

    # --- Case 3: tiny VMEM budget override forces N- and K-tiling, exercising
    # the accumulator / pl.when finalize path and the epilogue bias + omega
    # multiply, with NO host-side padding (all dims already lane/sublane-aligned).
    M3, K3, N3 = 64, 256, 384
    x3 = jax.random.normal(k3, (M3, K3), jnp.float32)
    w3, b3 = init_sine_layer_params(k4, K3, N3, is_first=False, omega_0=omega)
    out3 = jax.block_until_ready(
        sine_layer(x3, w3, b3, omega_0=omega, vmem_budget_bytes=256 * 1024))
    assert out3.shape == (M3, N3)
    assert jnp.allclose(out3, ref_fwd(x3, w3, b3, omega), atol=5e-4, rtol=5e-4)

    print("KERNEL_OK")
</pallas_src>

<mosaic_0001>
module attributes {stable_mosaic.version = 11 : i64} {
  func.func @_sine_layer_kernel(%arg0: i32, %arg1: i32, %arg2: memref<32x128xf32, #tpu.memory_space<vmem>>, %arg3: memref<128x128xf32, #tpu.memory_space<vmem>>, %arg4: memref<32x128xf32, #tpu.memory_space<vmem>>) attributes {dimension_semantics = [#tpu.dimension_semantics<parallel>, #tpu.dimension_semantics<parallel>], iteration_bounds = array<i64: 2, 1>, scalar_prefetch = 0 : i64, scratch_operands = 0 : i64, tpu.core_type = #tpu.core_type<tc>, window_params = [{transform_indices = @transform_0, window_bounds = array<i64: 32, 128>}, {pipeline_mode = #tpu.pipeline_mode<synchronous>, transform_indices = @transform_1, window_bounds = array<i64: 128, 128>}, {transform_indices = @transform_2, window_bounds = array<i64: 32, 128>}]} {
    %c0 = arith.constant 0 : index
    %c0_0 = arith.constant 0 : index
    %0 = vector.load %arg2[%c0, %c0_0] : memref<32x128xf32, #tpu.memory_space<vmem>>, vector<32x128xf32>
    %c0_1 = arith.constant 0 : index
    %c0_2 = arith.constant 0 : index
    %1 = vector.load %arg3[%c0_1, %c0_2] : memref<128x128xf32, #tpu.memory_space<vmem>>, vector<128x128xf32>
    %cst = arith.constant dense<0.000000e+00> : vector<32x128xf32>
    %2 = tpu.matmul %0, %1, %cst {dimension_numbers = #tpu.dot_dimension_numbers<[1], [0], [0], [1], [0, 0, 1, 1], [], []>} : vector<32x128xf32>, vector<128x128xf32>, vector<32x128xf32> -> vector<32x128xf32>
    %3 = math.sin %2 : vector<32x128xf32>
    %c0_3 = arith.constant 0 : index
    %c0_4 = arith.constant 0 : index
    %4 = vector.load %arg4[%c0_3, %c0_4] : memref<32x128xf32, #tpu.memory_space<vmem>>, vector<32x128xf32>
    tpu.vector_store %arg4[%c0_3, %c0_4], %3 {strides = array<i32>} : memref<32x128xf32, #tpu.memory_space<vmem>>, vector<32x128xf32>,
    return
  }
  func.func @transform_0(%arg0: i32, %arg1: i32) -> (i32, i32) {
    %c0_i32 = arith.constant 0 : i32
    %c0_i32_0 = arith.constant 0 : i32
    return %arg0, %c0_i32 : i32, i32
  }
  func.func @transform_1(%arg0: i32, %arg1: i32) -> (i32, i32) {
    %c0_i32 = arith.constant 0 : i32
    %c0_i32_0 = arith.constant 0 : i32
    return %c0_i32, %arg1 : i32, i32
  }
  func.func @transform_2(%arg0: i32, %arg1: i32) -> (i32, i32) {
    %c0_i32 = arith.constant 0 : i32
    return %arg0, %arg1 : i32, i32
  }
}

</mosaic_0001>

<llo_original>
// kernel: tpu_custom_call.1
$region0: #{tpu_custom_call.1}
  #allocation0 [shape = 'u32[]', space=smem, size = 0x4, offset = 0x4, fixed_abs, tag = 'smem constant byte address 0x4 - core index']
  #allocation1 [shape = 'u32[144,128]{1,0:T(1,128)}', space=vmem, size = 0x12000, scoped, tag = 'internal scratch']
  %s0 = inlined_call_operand.hbm [shape: f32[64,128], index: 0, kind: input, shape index: {}]
  %s1 = inlined_call_operand.hbm [shape: f32[128,128], index: 1, kind: input, shape index: {}]
  %s2 = inlined_call_operand.hbm [shape: f32[64,128], index: 2, kind: output, shape index: {}]
  %s3 = sld [smem:[#allocation0]]
  $region49: #{tpu_custom_call.1} parent=0
    _
  %s5 = ssub.s32 1, %s3
  %s6 = scalar_select 0, %s5, %s3
  $region1: #{tpu_custom_call.1} parent=0
    #allocation2 [shape = 'u8[32768]{0}', space=vmem, size = 0x8000, scoped, tag = 'input window, operand 0']
    #allocation3 [shape = 's32[2]{0}', space=sflag, size = 0x8, scoped, tag = 'scoped memory for tpu_custom_call.1']
    #allocation4 [shape = 's32[2]{0}', space=sflag, size = 0x8, scoped, tag = 'scoped memory for tpu_custom_call.1']
    #allocation5 [shape = 'u8[65536]{0}', space=vmem, size = 0x10000, scoped, tag = 'input window, operand 1, single buffered']
    #allocation6 [shape = 's32[1]{0}', space=sflag, size = 0x4, scoped, tag = 'scoped memory for tpu_custom_call.1']
    #allocation7 [shape = 'u8[32768]{0}', space=vmem, size = 0x8000, scoped, tag = 'output window, operand 0']
    %7 = vsyncpa [#allocation3], 0
    %s8 = scalar_lea.sflag [#allocation3], 1
    %9 = vsyncpa %s8, 0
    %10 = vsyncpa [#allocation6], 0
    %11 = vsyncpa [#allocation4], 0
    %s12 = scalar_lea.sflag [#allocation4], 1
    %13 = vsyncpa %s12, 0
    loop: start=0, step=1, limit=4
    $region2: #{tpu_custom_call.1} parent=1 // loop_pre_header
      _
    $region3: #{tpu_custom_call.1} parent=1 // loop_header
      %s15 = sphi 0, %s19
      %p16 = scmp.ge.s32.totalorder %s15, 4
      %s22 = sphi 0, %s34
      %s23 = sphi 0, %s30
      %s24 = sphi 0, %s22
      %s25 = sphi 0, %s23
      %s26 = sphi 0, %s24
      %s27 = sphi 0, %s25
      %s37 = sphi 0, %s39
      %s40 = sphi 0, %s37
      %s41 = sphi 0, %s40
      %s57 = sphi 0, %s41
      %s63 = sphi 0, %s65
      %s66 = sphi 0, %s63
      %s67 = sphi 0, %s66
      %s83 = sphi 0, %s67
      %s91 = sphi 0, %s93
      %s94 = sphi 0, %s91
      %s95 = sphi 0, %s94
      %s111 = sphi 0, %s95
    $region4: #{tpu_custom_call.1} parent=1 // loop_header_branch
      %18 = sbr.rel (%p16) target = $region8
    $region5: #{tpu_custom_call.1} parent=1 // loop_body
      %s20 = ssub.s32 %s15, 1
      %s21 = ssub.s32 %s15, 2
      %s28 = sadd.s32 1, %s23
      %p29 = scmp.ge.s32.totalorder %s28, 1
      %s30 = scalar_select %p29, 0, %s28
      %s31 = sadd.s32 1, %s22
      %s32 = scalar_select %p29, %s31, %s22
      %p33 = scmp.ge.s32.totalorder %s32, 2
      %s34 = scalar_select %p33, 0, %s32
      %s35 = ssub.s32 %s22, %s34
      %p36 = scmp.eq.s32.totalorder %s35, 0
      %s38 = sadd.s32 %s37, 1
      %s39 = scalar_select %p36, %s37, %s38
      %p42 = pneg %p36
      %p43 = scmp.eq.s32.totalorder %s15, 1
      %p44 = por %p42, %p43
      %p45 = scmp.ne.s32.totalorder %s37, %s40
      %p46 = scmp.eq.s32.totalorder %s15, 0
      %p47 = por %p45, %p46
      %p48 = scmp.ne.s32.totalorder %s37, %s40
      %p49 = scmp.eq.s32.totalorder %s20, 1
      %p50 = por %p48, %p49
      %p51 = scmp.ne.s32.totalorder %s40, %s41
      %p52 = scmp.eq.s32.totalorder %s20, 0
      %p53 = por %p51, %p52
      %p54 = scmp.ne.s32.totalorder %s40, %s41
      %p55 = scmp.eq.s32.totalorder %s21, 1
      %p56 = por %p54, %p55
      %p58 = scmp.ne.s32.totalorder %s41, %s57
      %p59 = scmp.eq.s32.totalorder %s21, 0
      %p60 = por %p58, %p59
      %s61 = ssub.s32 %s23, %s30
      %p62 = scmp.eq.s32.totalorder %s61, 0
      %s64 = sadd.s32 %s63, 1
      %s65 = scalar_select %p62, %s63, %s64
      %p68 = pneg %p62
      %p69 = scmp.eq.s32.totalorder %s15, 1
      %p70 = por %p68, %p69
      %p71 = scmp.ne.s32.totalorder %s63, %s66
      %p72 = scmp.eq.s32.totalorder %s15, 0
      %p73 = por %p71, %p72
      %p74 = scmp.ne.s32.totalorder %s63, %s66
      %p75 = scmp.eq.s32.totalorder %s20, 1
      %p76 = por %p74, %p75
      %p77 = scmp.ne.s32.totalorder %s66, %s67
      %p78 = scmp.eq.s32.totalorder %s20, 0
      %p79 = por %p77, %p78
      %p80 = scmp.ne.s32.totalorder %s66, %s67
      %p81 = scmp.eq.s32.totalorder %s21, 1
      %p82 = por %p80, %p81
      %p84 = scmp.ne.s32.totalorder %s67, %s83
      %p85 = scmp.eq.s32.totalorder %s21, 0
      %p86 = por %p84, %p85
      %s87 = ssub.s32 %s22, %s34
      %s88 = ssub.s32 %s23, %s30
      %s89 = sor.u32 %s87, %s88
      %p90 = scmp.eq.s32.totalorder %s89, 0
      %s92 = sadd.s32 %s91, 1
      %s93 = scalar_select %p90, %s91, %s92
      %p96 = pneg %p90
      %p97 = scmp.eq.s32.totalorder %s15, 1
      %p98 = por %p96, %p97
      %p99 = scmp.ne.s32.totalorder %s91, %s94
      %p100 = scmp.eq.s32.totalorder %s15, 0
      %p101 = por %p99, %p100
      %p102 = scmp.ne.s32.totalorder %s91, %s94
      %p103 = scmp.eq.s32.totalorder %s20, 1
      %p104 = por %p102, %p103
      %p105 = scmp.ne.s32.totalorder %s94, %s95
      %p106 = scmp.eq.s32.totalorder %s20, 0
      %p107 = por %p105, %p106
      %p108 = scmp.ne.s32.totalorder %s94, %s95
      %p109 = scmp.eq.s32.totalorder %s21, 1
      %p110 = por %p108, %p109
      %p112 = scmp.ne.s32.totalorder %s95, %s111
      %p113 = scmp.eq.s32.totalorder %s21, 0
      %p114 = por %p112, %p113
      %p115 = scmp.le.s32.totalorder 1, %s15
      %p116 = scmp.lt.s32.totalorder %s15, 3
      %p117 = pnand %p115, %p116
      %p118 = pneg %p117
      // Predicated region
      $region9: #{tpu_custom_call.1} parent=5 // pred_check
        _
      $region10: #{tpu_custom_call.1} parent=5 // pred_check_branch
        %120 = sbr.rel (%p117) target = $region12
      $region11: #{tpu_custom_call.1} parent=5 // pred_region
        %s121 = ssub.s32 %s15, 1
        // Predicated region
        $region13: #{tpu_custom_call.1} parent=11 // pred_check
          %p122 = pneg %p79
        $region14: #{tpu_custom_call.1} parent=11 // pred_check_branch
          %124 = sbr.rel (%p122) target = $region16
        $region15: #{tpu_custom_call.1} parent=11 // pred_region
          %s126 = ssub.s32 2048, 2048
          %127 = vsyncadd [#allocation6], %s126
          %s128 = smul.addr %s25, 128
          %s129 = scalar_lea.hbm %s1, %s128
          %s130 = sshll.u32 [#allocation5], 4
          %s131 = int_to_ptr.vmem [resolvable:$true] %s130
          %136 = dma.hbm_to_vmem [thread:$0]  %s129, 2048, %s131, [#allocation6], 128, 128, 8
        $region16: #{tpu_custom_call.1} parent=11 // pred_fallthru
          _
      $region12: #{tpu_custom_call.1} parent=5 // pred_fallthru
        _
      %p137 = scmp.lt.s32.totalorder %s15, 2
      // Predicated region
      $region17: #{tpu_custom_call.1} parent=5 // pred_check
        %p138 = pneg %p137
      $region18: #{tpu_custom_call.1} parent=5 // pred_check_branch
        %140 = sbr.rel (%p138) target = $region20
      $region19: #{tpu_custom_call.1} parent=5 // pred_region
        // Predicated region
        $region21: #{tpu_custom_call.1} parent=19 // pred_check
          %p141 = pneg %p47
        $region22: #{tpu_custom_call.1} parent=19 // pred_check_branch
          %143 = sbr.rel (%p141) target = $region24
        $region23: #{tpu_custom_call.1} parent=19 // pred_region
          %s144 = sand.u32 %s37, 1
          %s145 = scalar_lea.sflag [#allocation3], %s144
          %s146 = sand.u32 %s37, 1
          %s147 = smul.addr %s146, 32
          %s148 = scalar_lea.vmem [#allocation2], %s147
          %s149 = smul.u32 4, %s22
          %s151 = ssub.s32 512, 512
          %152 = vsyncadd %s145, %s151
          %s153 = smul.addr %s149, 128
          %s154 = scalar_lea.hbm %s0, %s153
          %s155 = sshll.u32 %s148, 4
          %s156 = int_to_ptr.vmem [resolvable:$true] %s155
          %161 = dma.hbm_to_vmem [thread:$0]  %s154, 512, %s156, %s145, 128, 128, 8
        $region24: #{tpu_custom_call.1} parent=19 // pred_fallthru
          _
      $region20: #{tpu_custom_call.1} parent=5 // pred_fallthru
        _
      %p162 = scmp.le.s32.totalorder 1, %s15
      %p163 = scmp.lt.s32.totalorder %s15, 3
      %p164 = pnand %p162, %p163
      %p165 = pneg %p164
      // Predicated region
      $region25: #{tpu_custom_call.1} parent=5 // pred_check
        _
      $region26: #{tpu_custom_call.1} parent=5 // pred_check_branch
        %167 = sbr.rel (%p164) target = $region28
      $region27: #{tpu_custom_call.1} parent=5 // pred_region
        %s168 = ssub.s32 %s15, 1
        %s169 = sand.u32 %s40, 1
        %s170 = scalar_lea.sflag [#allocation3], %s169
        %s171 = sand.u32 %s40, 1
        %s172 = smul.addr %s171, 32
        %s173 = scalar_lea.vmem [#allocation2], %s172
        // Predicated region
        $region29: #{tpu_custom_call.1} parent=27 // pred_check
          %p174 = pneg %p53
        $region30: #{tpu_custom_call.1} parent=27 // pred_check_branch
          %176 = sbr.rel (%p174) target = $region32
        $region31: #{tpu_custom_call.1} parent=27 // pred_region
          %177 = dma.done %s170, 512
        $region32: #{tpu_custom_call.1} parent=27 // pred_fallthru
          _
        // Predicated region
        $region33: #{tpu_custom_call.1} parent=27 // pred_check
          %p178 = pneg %p79
        $region34: #{tpu_custom_call.1} parent=27 // pred_check_branch
          %180 = sbr.rel (%p178) target = $region36
        $region35: #{tpu_custom_call.1} parent=27 // pred_region
          %181 = dma.done [#allocation6], 2048
        $region36: #{tpu_custom_call.1} parent=27 // pred_fallthru
          _
        %s182 = sand.u32 %s40, 1
        %s183 = scalar_lea.sflag [#allocation3], %s182
        %s184 = sand.u32 %s40, 1
        %s185 = smul.addr %s184, 32
        %s186 = scalar_lea.vmem [#allocation2], %s185
        %p187 = pneg %p53
        %p188 = pneg %p50
        %p189 = pneg %p79
        %p190 = pneg %p76
        %p191 = pneg %p107
        %p192 = pneg %p104
        %s193 = sand.u32 %s94, 1
        %s194 = scalar_lea.sflag [#allocation4], %s193
        %s195 = sand.u32 %s94, 1
        %s196 = smul.addr %s195, 32
        %s197 = scalar_lea.vmem [#allocation7], %s196
        %s198 = smul.u32 4, %s24
        %s199 = smul.u32 4, %s24
        %v200 = vld [vmem:[%s173] sm:$0xff]
        %v201 = vld [vmem:[%s173 + $0x8] sm:$0xff]
        %v202 = vld [vmem:[%s173 + $0x10] sm:$0xff]
        %v203 = vld [vmem:[%s173 + $0x18] sm:$0xff]
        %v204 = vld [vmem:[#allocation5] sm:$0xff]
        %v205 = vld [vmem:[#allocation5 + $0x8] sm:$0xff]
        %v206 = vld [vmem:[#allocation5 + $0x10] sm:$0xff]
        %v207 = vld [vmem:[#allocation5 + $0x18] sm:$0xff]
        %v208 = vld [vmem:[#allocation5 + $0x20] sm:$0xff]
        %v209 = vld [vmem:[#allocation5 + $0x28] sm:$0xff]
        %v210 = vld [vmem:[#allocation5 + $0x30] sm:$0xff]
        %v211 = vld [vmem:[#allocation5 + $0x38] sm:$0xff]
        %v212 = vld [vmem:[#allocation5 + $0x40] sm:$0xff]
        %v213 = vld [vmem:[#allocation5 + $0x48] sm:$0xff]
        %v214 = vld [vmem:[#allocation5 + $0x50] sm:$0xff]
        %v215 = vld [vmem:[#allocation5 + $0x58] sm:$0xff]
        %v216 = vld [vmem:[#allocation5 + $0x60] sm:$0xff]
        %v217 = vld [vmem:[#allocation5 + $0x68] sm:$0xff]
        %v218 = vld [vmem:[#allocation5 + $0x70] sm:$0xff]
        %v219 = vld [vmem:[#allocation5 + $0x78] sm:$0xff]
        %220 = vmatprep.subr.mxu0 0.0
        %221 = vmatpush1.msra.mxu0 %v204
        %222 = vmatprep.subr.mxu0 0.0
        %223 = vmatpush1.msra.mxu0 %v205
        %224 = vmatprep.subr.mxu0 0.0
        %225 = vmatpush1.msra.mxu0 %v206
        %226 = vmatprep.subr.mxu0 0.0
        %227 = vmatpush1.msra.mxu0 %v207
        %228 = vmatprep.subr.mxu0 0.0
        %229 = vmatpush1.msra.mxu0 %v208
        %230 = vmatprep.subr.mxu0 0.0
        %231 = vmatpush1.msra.mxu0 %v209
        %232 = vmatprep.subr.mxu0 0.0
        %233 = vmatpush1.msra.mxu0 %v210
        %234 = vmatprep.subr.mxu0 0.0
        %235 = vmatpush1.msra.mxu0 %v211
        %236 = vmatprep.subr.mxu0 0.0
        %237 = vmatpush1.msra.mxu0 %v212
        %238 = vmatprep.subr.mxu0 0.0
        %239 = vmatpush1.msra.mxu0 %v213
        %240 = vmatprep.subr.mxu0 0.0
        %241 = vmatpush1.msra.mxu0 %v214
        %242 = vmatprep.subr.mxu0 0.0
        %243 = vmatpush1.msra.mxu0 %v215
        %244 = vmatprep.subr.mxu0 0.0
        %245 = vmatpush1.msra.mxu0 %v216
        %246 = vmatprep.subr.mxu0 0.0
        %247 = vmatpush1.msra.mxu0 %v217
        %248 = vmatprep.subr.mxu0 0.0
        %249 = vmatpush1.msra.mxu0 %v218
        %250 = vmatprep.subr.mxu0 0.0
        %251 = vmatpush1.msra.mxu0 %v219
        %252 = vmatprep.subr.mxu0 0.0
        %253 = vmatpush1.msra.mxu0 0.0
        %254 = vmatprep.subr.mxu0 0.0
        %255 = vmatpush1.msra.mxu0 0.0
        %256 = vmatprep.subr.mxu0 0.0
        %257 = vmatpush1.msra.mxu0 0.0
        %258 = vmatprep.subr.mxu0 0.0
        %259 = vmatpush1.msra.mxu0 0.0
        %260 = vmatprep.subr.mxu0 0.0
        %261 = vmatpush1.msra.mxu0 0.0
        %262 = vmatprep.subr.mxu0 0.0
        %263 = vmatpush1.msra.mxu0 0.0
        %264 = vmatprep.subr.mxu0 0.0
        %265 = vmatpush1.msra.mxu0 0.0
        %266 = vmatprep.subr.mxu0 0.0
        %267 = vmatpush1.msra.mxu0 0.0
        %268 = vmatprep.subr.mxu0 0.0
        %269 = vmatpush1.msra.mxu0 0.0
        %270 = vmatprep.subr.mxu0 0.0
        %271 = vmatpush1.msra.mxu0 0.0
        %272 = vmatprep.subr.mxu0 0.0
        %273 = vmatpush1.msra.mxu0 0.0
        %274 = vmatprep.subr.mxu0 0.0
        %275 = vmatpush1.msra.mxu0 0.0
        %276 = vmatprep.subr.mxu0 0.0
        %277 = vmatpush1.msra.mxu0 0.0
        %278 = vmatprep.subr.mxu0 0.0
        %279 = vmatpush1.msra.mxu0 0.0
        %280 = vmatprep.subr.mxu0 0.0
        %281 = vmatpush1.msra.mxu0 0.0
        %282 = vmatprep.subr.mxu0 0.0
        %283 = vmatpush1.msra.mxu0 0.0
        %284 = vmatprep.mubr.f32.mxu0 0.0
        %285 = vmatmul.mubr.f32.gmra.mrb[0].mxu0 %v200
        %v286 = vpop.f32.mrb[0].mxu0
        %v287 = vadd.f32 0.0, %v286
        %v288 = vpop.f32.mrb[0].mxu0
        %289 = vmatprep.mubr.f32.mxu0 0.0
        %290 = vmatmul.mubr.f32.gmra.mrb[0].mxu0 %v201
        %v291 = vpop.f32.mrb[0].mxu0
        %v292 = vadd.f32 0.0, %v291
        %v293 = vpop.f32.mrb[0].mxu0
        %294 = vmatprep.mubr.f32.mxu0 0.0
        %295 = vmatmul.mubr.f32.gmra.mrb[0].mxu0 %v202
        %v296 = vpop.f32.mrb[0].mxu0
        %v297 = vadd.f32 0.0, %v296
        %v298 = vpop.f32.mrb[0].mxu0
        %299 = vmatprep.mubr.f32.mxu0 0.0
        %300 = vmatmul.mubr.f32.gmra.mrb[0].mxu0 %v203
        %v301 = vpop.f32.mrb[0].mxu0
        %v302 = vadd.f32 0.0, %v301
        %v303 = vpop.f32.mrb[0].mxu0
        %304 = vdwg.mxu0
        %v305 = vand.u32 2147483647, %v287
        %vm306 = vcmp.le.f32.partialorder %v305, 0.7853982
        %vm307 = vcmp.lt.s32.totalorder %v287, 0
        %v308 = vand.u32 %v287, 2139095040
        %v309 = vshrl.u32 %v308, 23
        %v310 = vsub.s32 %v309, 127
        %v311 = vand.u32 2147483647, %v287
        %v312 = vand.u32 %v311, 8388607
        %v313 = vor.u32 %v312, 8388608
        %v314 = vsub.s32 0, %v313
        %v315 = vadd.s32 %v310, 1
        %vm316 = vcmp.gt.s32.totalorder %v315, 0
        %v317 = vsel %vm316, %v315, 0
        %v318 = vshrl.u32 %v317, 5
        %v319 = vand.u32 %v317, 31
        %v320 = vsub.s32 32, %v319
        %v321 = vshrl.u32 683565275, %v320
        %v322 = vshll.u32 683565275, %v319
        %v323 = vshrl.u32 2475754826, %v320
        %v324 = vor.u32 %v322, %v323
        %v325 = vshll.u32 2475754826, %v319
        %v326 = vshrl.u32 2131351028, %v320
        %v327 = vor.u32 %v325, %v326
        %v328 = vshll.u32 2131351028, %v319
        %v329 = vshrl.u32 2102212464, %v320
        %v330 = vor.u32 %v328, %v329
        %v331 = vshll.u32 2102212464, %v319
        %v332 = vshrl.u32 920167782, %v320
        %v333 = vor.u32 %v331, %v332
        %v334 = vshll.u32 920167782, %v319
        %v335 = vshrl.u32 1326507024, %v320
        %v336 = vor.u32 %v334, %v335
        %vm337 = vcmp.lt.s32.totalorder %v318, 1
        %vm338 = vcmp.lt.s32.totalorder %v318, 2
        %vm339 = vcmp.lt.s32.totalorder %v318, 3
        %vm340 = vcmp.lt.s32.totalorder %v318, 4
        %v341 = vsel %vm337, %v321, %v324
        %v342 = vsel %vm340, %v330, 2102212464
        %v343 = vsel %vm339, %v327, %v342
        %v344 = vsel %vm338, %v341, %v343
        %v345 = vsel %vm337, %v324, %v327
        %v346 = vsel %vm340, %v333, 920167782
        %v347 = vsel %vm339, %v330, %v346
        %v348 = vsel %vm338, %v345, %v347
        %v349 = vsel %vm337, %v327, %v330
        %v350 = vsel %vm340, %v336, 1326507024
        %v351 = vsel %vm339, %v333, %v350
        %v352 = vsel %vm338, %v349, %v351
        %v353 = vshll.u32 %v313, 8
        %v354 = vmul.u32.u64.compose %v353, %v352
        %v355 = vextract.low.u32 %v354
        %v356 = vextract.high.u32 %v354
        %v357 = vmul.u32.u64.compose %v353, %v348
        %v358 = vextract.low.u32 %v357
        %v359 = vextract.high.u32 %v357
        %v360 = vmul.u32 %v353, %v344
        %v361 = vadd.s32 %v356, %v358
        %vm362 = vc.u32 %v356, %v358
        %v363 = vadd.s32 %v359, 1
        %v364 = vsel %vm362, %v363, %v359
        %v365 = vadd.s32 %v360, %v364
        %v366 = vadd.s32 %v365, 536870912
        %v367 = vshrl.u32 %v366, 30
        %v368 = vshll.u32 %v367, 30
        %v369 = vsub.s32 %v365, %v368
        %vm370 = vcmp.lt.s32.totalorder %v369, 0
        %v371 = vsub.s32 0, %v369
        %v372 = vsel %vm370, %v371, %v369
        %v373 = vclz %v372
        %v374 = vsub.s32 %v373, 2
        %vm375 = vcmp.gt.s32.totalorder 0, %v374
        %v376 = vsel %vm375, 0, %v374
        %v377 = vsub.s32 32, %v376
        %v378 = vshll.u32 %v369, %v376
        %v379 = vshrl.u32 %v361, %v377
        %v380 = vor.u32 %v378, %v379
        %v381 = vsub.s32 4294967266, %v376
        %v382 = vadd.s32 %v381, 127
        %v383 = vshll.u32 %v382, 23
        %v384 = vor.u32 4788187, %v383
        %v385 = vand.u32 2147483647, %v384
        %v387 = vcvt.s32.f32 %v380
        %v388 = vmul.f32 %v387, %v385
        %v389 = vxor.u32 %v388, 2147483648
        %v390 = vsel %vm307, %v389, %v388
        %v391 = vsub.s32 4, %v367
        %v392 = vsel %vm307, %v391, %v367
        %v393 = vsel %vm306, %v287, %v390
        %v394 = vsel %vm306, 0, %v392
        %v395 = vcosq.f32.pop %v393
        %v396 = vsinq.f32.pop %v393
        %vm397 = vweird.f32 %v287
        %v398 = vadd.s32 %v394, 3
        %v399 = vand.u32 %v398, 3
        %vm400 = vcmp.lt.s32.totalorder %v399, 2
        %vm401 = vcmp.eq.s32.totalorder %v399, 0
        %v402 = vxor.u32 %v396, 2147483648
        %v403 = vsel %vm401, %v395, %v402
        %vm404 = vcmp.eq.s32.totalorder %v399, 2
        %v405 = vxor.u32 %v395, 2147483648
        %v406 = vsel %vm404, %v405, %v396
        %v407 = vsel %vm400, %v403, %v406
        %v408 = vsel %vm397, nan, %v407
        %v409 = vand.u32 2147483647, %v292
        %vm410 = vcmp.le.f32.partialorder %v409, 0.7853982
        %vm411 = vcmp.lt.s32.totalorder %v292, 0
        %v412 = vand.u32 %v292, 2139095040
        %v413 = vshrl.u32 %v412, 23
        %v414 = vsub.s32 %v413, 127
        %v415 = vand.u32 2147483647, %v292
        %v416 = vand.u32 %v415, 8388607
        %v417 = vor.u32 %v416, 8388608
        %v418 = vsub.s32 0, %v417
        %v419 = vadd.s32 %v414, 1
        %vm420 = vcmp.gt.s32.totalorder %v419, 0
        %v421 = vsel %vm420, %v419, 0
        %v422 = vshrl.u32 %v421, 5
        %v423 = vand.u32 %v421, 31
        %v424 = vsub.s32 32, %v423
        %v425 = vshrl.u32 683565275, %v424
        %v426 = vshll.u32 683565275, %v423
        %v427 = vshrl.u32 2475754826, %v424
        %v428 = vor.u32 %v426, %v427
        %v429 = vshll.u32 2475754826, %v423
        %v430 = vshrl.u32 2131351028, %v424
        %v431 = vor.u32 %v429, %v430
        %v432 = vshll.u32 2131351028, %v423
        %v433 = vshrl.u32 2102212464, %v424
        %v434 = vor.u32 %v432, %v433
        %v435 = vshll.u32 2102212464, %v423
        %v436 = vshrl.u32 920167782, %v424
        %v437 = vor.u32 %v435, %v436
        %v438 = vshll.u32 920167782, %v423
        %v439 = vshrl.u32 1326507024, %v424
        %v440 = vor.u32 %v438, %v439
        %vm441 = vcmp.lt.s32.totalorder %v422, 1
        %vm442 = vcmp.lt.s32.totalorder %v422, 2
        %vm443 = vcmp.lt.s32.totalorder %v422, 3
        %vm444 = vcmp.lt.s32.totalorder %v422, 4
        %v445 = vsel %vm441, %v425, %v428
        %v446 = vsel %vm444, %v434, 2102212464
        %v447 = vsel %vm443, %v431, %v446
        %v448 = vsel %vm442, %v445, %v447
        %v449 = vsel %vm441, %v428, %v431
        %v450 = vsel %vm444, %v437, 920167782
        %v451 = vsel %vm443, %v434, %v450
        %v452 = vsel %vm442, %v449, %v451
        %v453 = vsel %vm441, %v431, %v434
        %v454 = vsel %vm444, %v440, 1326507024
        %v455 = vsel %vm443, %v437, %v454
        %v456 = vsel %vm442, %v453, %v455
        %v457 = vshll.u32 %v417, 8
        %v458 = vmul.u32.u64.compose %v457, %v456
        %v459 = vextract.low.u32 %v458
        %v460 = vextract.high.u32 %v458
        %v461 = vmul.u32.u64.compose %v457, %v452
        %v462 = vextract.low.u32 %v461
        %v463 = vextract.high.u32 %v461
        %v464 = vmul.u32 %v457, %v448
        %v465 = vadd.s32 %v460, %v462
        %vm466 = vc.u32 %v460, %v462
        %v467 = vadd.s32 %v463, 1
        %v468 = vsel %vm466, %v467, %v463
        %v469 = vadd.s32 %v464, %v468
        %v470 = vadd.s32 %v469, 536870912
        %v471 = vshrl.u32 %v470, 30
        %v472 = vshll.u32 %v471, 30
        %v473 = vsub.s32 %v469, %v472
        %vm474 = vcmp.lt.s32.totalorder %v473, 0
        %v475 = vsub.s32 0, %v473
        %v476 = vsel %vm474, %v475, %v473
        %v477 = vclz %v476
        %v478 = vsub.s32 %v477, 2
        %vm479 = vcmp.gt.s32.totalorder 0, %v478
        %v480 = vsel %vm479, 0, %v478
        %v481 = vsub.s32 32, %v480
        %v482 = vshll.u32 %v473, %v480
        %v483 = vshrl.u32 %v465, %v481
        %v484 = vor.u32 %v482, %v483
        %v485 = vsub.s32 4294967266, %v480
        %v486 = vadd.s32 %v485, 127
        %v487 = vshll.u32 %v486, 23
        %v488 = vor.u32 4788187, %v487
        %v489 = vand.u32 2147483647, %v488
        %v491 = vcvt.s32.f32 %v484
        %v492 = vmul.f32 %v491, %v489
        %v493 = vxor.u32 %v492, 2147483648
        %v494 = vsel %vm411, %v493, %v492
        %v495 = vsub.s32 4, %v471
        %v496 = vsel %vm411, %v495, %v471
        %v497 = vsel %vm410, %v292, %v494
        %v498 = vsel %vm410, 0, %v496
        %v499 = vcosq.f32.pop %v497
        %v500 = vsinq.f32.pop %v497
        %vm501 = vweird.f32 %v292
        %v502 = vadd.s32 %v498, 3
        %v503 = vand.u32 %v502, 3
        %vm504 = vcmp.lt.s32.totalorder %v503, 2
        %vm505 = vcmp.eq.s32.totalorder %v503, 0
        %v506 = vxor.u32 %v500, 2147483648
        %v507 = vsel %vm505, %v499, %v506
        %vm508 = vcmp.eq.s32.totalorder %v503, 2
        %v509 = vxor.u32 %v499, 2147483648
        %v510 = vsel %vm508, %v509, %v500
        %v511 = vsel %vm504, %v507, %v510
        %v512 = vsel %vm501, nan, %v511
        %v513 = vand.u32 2147483647, %v297
        %vm514 = vcmp.le.f32.partialorder %v513, 0.7853982
        %vm515 = vcmp.lt.s32.totalorder %v297, 0
        %v516 = vand.u32 %v297, 2139095040
        %v517 = vshrl.u32 %v516, 23
        %v518 = vsub.s32 %v517, 127
        %v519 = vand.u32 2147483647, %v297
        %v520 = vand.u32 %v519, 8388607
        %v521 = vor.u32 %v520, 8388608
        %v522 = vsub.s32 0, %v521
        %v523 = vadd.s32 %v518, 1
        %vm524 = vcmp.gt.s32.totalorder %v523, 0
        %v525 = vsel %vm524, %v523, 0
        %v526 = vshrl.u32 %v525, 5
        %v527 = vand.u32 %v525, 31
        %v528 = vsub.s32 32, %v527
        %v529 = vshrl.u32 683565275, %v528
        %v530 = vshll.u32 683565275, %v527
        %v531 = vshrl.u32 2475754826, %v528
        %v532 = vor.u32 %v530, %v531
        %v533 = vshll.u32 2475754826, %v527
        %v534 = vshrl.u32 2131351028, %v528
        %v535 = vor.u32 %v533, %v534
        %v536 = vshll.u32 2131351028, %v527
        %v537 = vshrl.u32 2102212464, %v528
        %v538 = vor.u32 %v536, %v537
        %v539 = vshll.u32 2102212464, %v527
        %v540 = vshrl.u32 920167782, %v528
        %v541 = vor.u32 %v539, %v540
        %v542 = vshll.u32 920167782, %v527
        %v543 = vshrl.u32 1326507024, %v528
        %v544 = vor.u32 %v542, %v543
        %vm545 = vcmp.lt.s32.totalorder %v526, 1
        %vm546 = vcmp.lt.s32.totalorder %v526, 2
        %vm547 = vcmp.lt.s32.totalorder %v526, 3
        %vm548 = vcmp.lt.s32.totalorder %v526, 4
        %v549 = vsel %vm545, %v529, %v532
        %v550 = vsel %vm548, %v538, 2102212464
        %v551 = vsel %vm547, %v535, %v550
        %v552 = vsel %vm546, %v549, %v551
        %v553 = vsel %vm545, %v532, %v535
        %v554 = vsel %vm548, %v541, 920167782
        %v555 = vsel %vm547, %v538, %v554
        %v556 = vsel %vm546, %v553, %v555
        %v557 = vsel %vm545, %v535, %v538
        %v558 = vsel %vm548, %v544, 1326507024
        %v559 = vsel %vm547, %v541, %v558
        %v560 = vsel %vm546, %v557, %v559
        %v561 = vshll.u32 %v521, 8
        %v562 = vmul.u32.u64.compose %v561, %v560
        %v563 = vextract.low.u32 %v562
        %v564 = vextract.high.u32 %v562
        %v565 = vmul.u32.u64.compose %v561, %v556
        %v566 = vextract.low.u32 %v565
        %v567 = vextract.high.u32 %v565
        %v568 = vmul.u32 %v561, %v552
        %v569 = vadd.s32 %v564, %v566
        %vm570 = vc.u32 %v564, %v566
        %v571 = vadd.s32 %v567, 1
        %v572 = vsel %vm570, %v571, %v567
        %v573 = vadd.s32 %v568, %v572
        %v574 = vadd.s32 %v573, 536870912
        %v575 = vshrl.u32 %v574, 30
        %v576 = vshll.u32 %v575, 30
        %v577 = vsub.s32 %v573, %v576
        %vm578 = vcmp.lt.s32.totalorder %v577, 0
        %v579 = vsub.s32 0, %v577
        %v580 = vsel %vm578, %v579, %v577
        %v581 = vclz %v580
        %v582 = vsub.s32 %v581, 2
        %vm583 = vcmp.gt.s32.totalorder 0, %v582
        %v584 = vsel %vm583, 0, %v582
        %v585 = vsub.s32 32, %v584
        %v586 = vshll.u32 %v577, %v584
        %v587 = vshrl.u32 %v569, %v585
        %v588 = vor.u32 %v586, %v587
        %v589 = vsub.s32 4294967266, %v584
        %v590 = vadd.s32 %v589, 127
        %v591 = vshll.u32 %v590, 23
        %v592 = vor.u32 4788187, %v591
        %v593 = vand.u32 2147483647, %v592
        %v595 = vcvt.s32.f32 %v588
        %v596 = vmul.f32 %v595, %v593
        %v597 = vxor.u32 %v596, 2147483648
        %v598 = vsel %vm515, %v597, %v596
        %v599 = vsub.s32 4, %v575
        %v600 = vsel %vm515, %v599, %v575
        %v601 = vsel %vm514, %v297, %v598
        %v602 = vsel %vm514, 0, %v600
        %v603 = vcosq.f32.pop %v601
        %v604 = vsinq.f32.pop %v601
        %vm605 = vweird.f32 %v297
        %v606 = vadd.s32 %v602, 3
        %v607 = vand.u32 %v606, 3
        %vm608 = vcmp.lt.s32.totalorder %v607, 2
        %vm609 = vcmp.eq.s32.totalorder %v607, 0
        %v610 = vxor.u32 %v604, 2147483648
        %v611 = vsel %vm609, %v603, %v610
        %vm612 = vcmp.eq.s32.totalorder %v607, 2
        %v613 = vxor.u32 %v603, 2147483648
        %v614 = vsel %vm612, %v613, %v604
        %v615 = vsel %vm608, %v611, %v614
        %v616 = vsel %vm605, nan, %v615
        %v617 = vand.u32 2147483647, %v302
        %vm618 = vcmp.le.f32.partialorder %v617, 0.7853982
        %vm619 = vcmp.lt.s32.totalorder %v302, 0
        %v620 = vand.u32 %v302, 2139095040
        %v621 = vshrl.u32 %v620, 23
        %v622 = vsub.s32 %v621, 127
        %v623 = vand.u32 2147483647, %v302
        %v624 = vand.u32 %v623, 8388607
        %v625 = vor.u32 %v624, 8388608
        %v626 = vsub.s32 0, %v625
        %v627 = vadd.s32 %v622, 1
        %vm628 = vcmp.gt.s32.totalorder %v627, 0
        %v629 = vsel %vm628, %v627, 0
        %v630 = vshrl.u32 %v629, 5
        %v631 = vand.u32 %v629, 31
        %v632 = vsub.s32 32, %v631
        %v633 = vshrl.u32 683565275, %v632
        %v634 = vshll.u32 683565275, %v631
        %v635 = vshrl.u32 2475754826, %v632
        %v636 = vor.u32 %v634, %v635
        %v637 = vshll.u32 2475754826, %v631
        %v638 = vshrl.u32 2131351028, %v632
        %v639 = vor.u32 %v637, %v638
        %v640 = vshll.u32 2131351028, %v631
        %v641 = vshrl.u32 2102212464, %v632
        %v642 = vor.u32 %v640, %v641
        %v643 = vshll.u32 2102212464, %v631
        %v644 = vshrl.u32 920167782, %v632
        %v645 = vor.u32 %v643, %v644
        %v646 = vshll.u32 920167782, %v631
        %v647 = vshrl.u32 1326507024, %v632
        %v648 = vor.u32 %v646, %v647
        %vm649 = vcmp.lt.s32.totalorder %v630, 1
        %vm650 = vcmp.lt.s32.totalorder %v630, 2
        %vm651 = vcmp.lt.s32.totalorder %v630, 3
        %vm652 = vcmp.lt.s32.totalorder %v630, 4
        %v653 = vsel %vm649, %v633, %v636
        %v654 = vsel %vm652, %v642, 2102212464
        %v655 = vsel %vm651, %v639, %v654
        %v656 = vsel %vm650, %v653, %v655
        %v657 = vsel %vm649, %v636, %v639
        %v658 = vsel %vm652, %v645, 920167782
        %v659 = vsel %vm651, %v642, %v658
        %v660 = vsel %vm650, %v657, %v659
        %v661 = vsel %vm649, %v639, %v642
        %v662 = vsel %vm652, %v648, 1326507024
        %v663 = vsel %vm651, %v645, %v662
        %v664 = vsel %vm650, %v661, %v663
        %v665 = vshll.u32 %v625, 8
        %v666 = vmul.u32.u64.compose %v665, %v664
        %v667 = vextract.low.u32 %v666
        %v668 = vextract.high.u32 %v666
        %v669 = vmul.u32.u64.compose %v665, %v660
        %v670 = vextract.low.u32 %v669
        %v671 = vextract.high.u32 %v669
        %v672 = vmul.u32 %v665, %v656
        %v673 = vadd.s32 %v668, %v670
        %vm674 = vc.u32 %v668, %v670
        %v675 = vadd.s32 %v671, 1
        %v676 = vsel %vm674, %v675, %v671
        %v677 = vadd.s32 %v672, %v676
        %v678 = vadd.s32 %v677, 536870912
        %v679 = vshrl.u32 %v678, 30
        %v680 = vshll.u32 %v679, 30
        %v681 = vsub.s32 %v677, %v680
        %vm682 = vcmp.lt.s32.totalorder %v681, 0
        %v683 = vsub.s32 0, %v681
        %v684 = vsel %vm682, %v683, %v681
        %v685 = vclz %v684
        %v686 = vsub.s32 %v685, 2
        %vm687 = vcmp.gt.s32.totalorder 0, %v686
        %v688 = vsel %vm687, 0, %v686
        %v689 = vsub.s32 32, %v688
        %v690 = vshll.u32 %v681, %v688
        %v691 = vshrl.u32 %v673, %v689
        %v692 = vor.u32 %v690, %v691
        %v693 = vsub.s32 4294967266, %v688
        %v694 = vadd.s32 %v693, 127
        %v695 = vshll.u32 %v694, 23
        %v696 = vor.u32 4788187, %v695
        %v697 = vand.u32 2147483647, %v696
        %v699 = vcvt.s32.f32 %v692
        %v700 = vmul.f32 %v699, %v697
        %v701 = vxor.u32 %v700, 2147483648
        %v702 = vsel %vm619, %v701, %v700
        %v703 = vsub.s32 4, %v679
        %v704 = vsel %vm619, %v703, %v679
        %v705 = vsel %vm618, %v302, %v702
        %v706 = vsel %vm618, 0, %v704
        %v707 = vcosq.f32.pop %v705
        %v708 = vsinq.f32.pop %v705
        %vm709 = vweird.f32 %v302
        %v710 = vadd.s32 %v706, 3
        %v711 = vand.u32 %v710, 3
        %vm712 = vcmp.lt.s32.totalorder %v711, 2
        %vm713 = vcmp.eq.s32.totalorder %v711, 0
        %v714 = vxor.u32 %v708, 2147483648
        %v715 = vsel %vm713, %v707, %v714
        %vm716 = vcmp.eq.s32.totalorder %v711, 2
        %v717 = vxor.u32 %v707, 2147483648
        %v718 = vsel %vm716, %v717, %v708
        %v719 = vsel %vm712, %v715, %v718
        %v720 = vsel %vm709, nan, %v719
        %721 = vst [vmem:[%s197] sm:$0xff] %v408
        %722 = vst [vmem:[%s197 + $0x8] sm:$0xff] %v512
        %723 = vst [vmem:[%s197 + $0x10] sm:$0xff] %v616
        %724 = vst [vmem:[%s197 + $0x18] sm:$0xff] %v720
        %s725 = sand.u32 %s94, 1
        %s726 = scalar_lea.sflag [#allocation4], %s725
        %s727 = sand.u32 %s94, 1
        %s728 = smul.addr %s727, 32
        %s729 = scalar_lea.vmem [#allocation7], %s728
        // Predicated region
        $region37: #{tpu_custom_call.1} parent=27 // pred_check
          %p730 = pneg %p104
        $region38: #{tpu_custom_call.1} parent=27 // pred_check_branch
          %732 = sbr.rel (%p730) target = $region40
        $region39: #{tpu_custom_call.1} parent=27 // pred_region
          %s733 = smul.u32 4, %s24
          %s735 = ssub.s32 512, 512
          %736 = vsyncadd %s726, %s735
          %s737 = sadd.s32 %s25, %s733
          %s738 = smul.addr %s737, 128
          %s739 = scalar_lea.hbm %s2, %s738
          %s740 = sshll.u32 %s729, 4
          %s741 = int_to_ptr.vmem [resolvable:$true] %s740
          %746 = dma.vmem_to_hbm [thread:$0]  %s741, 512, %s739, %s726, 128, 128, 8
        $region40: #{tpu_custom_call.1} parent=27 // pred_fallthru
          _
      $region28: #{tpu_custom_call.1} parent=5 // pred_fallthru
        _
      %p747 = scmp.le.s32.totalorder 2, %s15
      // Predicated region
      $region41: #{tpu_custom_call.1} parent=5 // pred_check
        %p748 = pneg %p747
      $region42: #{tpu_custom_call.1} parent=5 // pred_check_branch
        %750 = sbr.rel (%p748) target = $region44
      $region43: #{tpu_custom_call.1} parent=5 // pred_region
        %s751 = ssub.s32 %s15, 2
        // Predicated region
        $region45: #{tpu_custom_call.1} parent=43 // pred_check
          %p752 = pneg %p110
        $region46: #{tpu_custom_call.1} parent=43 // pred_check_branch
          %754 = sbr.rel (%p752) target = $region48
        $region47: #{tpu_custom_call.1} parent=43 // pred_region
          %s755 = sand.u32 %s95, 1
          %s756 = scalar_lea.sflag [#allocation4], %s755
          %s757 = sand.u32 %s95, 1
          %s758 = smul.addr %s757, 32
          %s759 = scalar_lea.vmem [#allocation7], %s758
          %760 = dma.done %s756, 512
        $region48: #{tpu_custom_call.1} parent=43 // pred_fallthru
          _
      $region44: #{tpu_custom_call.1} parent=5 // pred_fallthru
        _
    $region6: #{tpu_custom_call.1} parent=1 // loop_footer
      %s19 = sadd.s32 1, %s15
    $region7: #{tpu_custom_call.1} parent=1 // loop_footer_branch
      %14 = sbr.rel target = $region3
    $region8: #{tpu_custom_call.1} parent=1 // loop_exit
      _
    %761 = vsyncpa [#allocation3], 1
    %s762 = scalar_lea.sflag [#allocation3], 1
    %763 = vsyncpa %s762, 1
    %764 = vsyncpa [#allocation6], 1
    %765 = vsyncpa [#allocation4], 1
    %s766 = scalar_lea.sflag [#allocation4], 1
    %767 = vsyncpa %s766, 1

</llo_original>
